<compile_context>
chip_gen: v5e
topology: v5e:2x2
jax: 0.10.0
libtpu: 0.0.40
codegen_flags: <defaults>
</compile_context>

<pallas_src>
import jax
import jax.numpy as jnp
from jax.experimental import pallas as pl
from jax.experimental.pallas import tpu as pltpu

HIDDEN = 768


def fold_params(w1, b1, w2, b2, seq_len):
    """One-time (model-load-time) algebraic fold of the two Linear layers.

    mean_S(x W1 + b1) W2 + b2 == sum_S(x) (W1 W2 / S) + (b1 W2 + b2)   (exact)

    Returns (w_eff, b_eff): (H, C) bf16 and (1, C) f32.
    """
    w1f = w1.astype(jnp.float32)
    w2f = w2.astype(jnp.float32)
    w_eff = jnp.dot(w1f, w2f, preferred_element_type=jnp.float32) / jnp.float32(seq_len)
    b_eff = jnp.dot(b1.astype(jnp.float32), w2f,
                    preferred_element_type=jnp.float32) + b2.astype(jnp.float32)
    return w_eff.astype(jnp.bfloat16), b_eff.reshape(1, -1).astype(jnp.float32)


def _mlc_kernel(x_ref, w_ref, b_ref, out_ref):
    # x_ref:   (bb, S, H) f32   activation tile ("input embeddings")
    # w_ref:   (H, C)     bf16  folded weight  W1 @ W2 / S
    # b_ref:   (1, C)     f32   folded bias    b1 @ W2 + b2
    # out_ref: (bb, C)    f32   sigmoid probabilities
    # Seq reduction: f32-accumulated sum, no materialized upcast copy of tile.
    pooled = jnp.sum(x_ref[...], axis=1, dtype=jnp.float32)            # (bb, H)
    # bf16 MXU fast path, f32 accumulation (K=768, N=C).
    logits = jnp.dot(pooled.astype(jnp.bfloat16), w_ref[...],
                     preferred_element_type=jnp.float32) + b_ref[...]
    out_ref[...] = jax.nn.sigmoid(logits)


def _choose_block_b(B, S, H, itemsize, target_bytes=2 << 20):
    """Pick a batch tile so bb*S*H*itemsize ~ target_bytes (1-4 MiB sweet spot)."""
    rows = max(1, int(target_bytes) // (S * H * itemsize))
    if rows >= B:
        return B                      # single full-batch tile
    bb = max(8, (rows // 8) * 8)      # keep the tile sublane-friendly
    return min(bb, B)


def multi_label_classifier_forward(x, attention_mask, w_eff, b_eff, *, block_b=None):
    """x: (B, S, H) float32 "input embeddings"; attention_mask: (B, S) (unused)."""
    del attention_mask  # test-mode forward mean-pools without the mask
    x = x.astype(jnp.float32)  # no-op if already f32; kernel consumes f32 directly
    B, S, H = x.shape
    C = w_eff.shape[1]
    itemsize = x.dtype.itemsize

    bb = block_b if block_b is not None else _choose_block_b(B, S, H, itemsize)
    bb = min(bb, B)
    grid = (pl.cdiv(B, bb),)
    # NOTE: if B % bb != 0 the last tile reads past-the-end batch rows; rows are
    # fully independent and the OOB output rows are dropped, so results are valid.

    tile_bytes = bb * S * H * itemsize
    # Double-buffered x tile + resident weight/bias + headroom; stay within the
    # v7x 64 MiB physical VMEM while lifting the v5e/v6e/v7x scoped defaults.
    vmem_limit = min(int(2 * tile_bytes + (H * C * 2) * 2 + (4 << 20)) + (32 << 20),
                     56 << 20)

    cost = pl.CostEstimate(
        flops=B * S * H + 2 * B * H * C + B * C,
        transcendentals=B * C,
        bytes_accessed=B * S * H * itemsize + H * C * 2 + C * 4 + B * C * 4,
    )

    return pl.pallas_call(
        _mlc_kernel,
        out_shape=jax.ShapeDtypeStruct((B, C), jnp.float32),
        grid_spec=pltpu.PrefetchScalarGridSpec(
            num_scalar_prefetch=0,
            grid=grid,
            in_specs=[
                pl.BlockSpec((bb, S, H), lambda i: (i, 0, 0)),   # batch-tiled x (f32)
                pl.BlockSpec((H, C), lambda i: (0, 0)),          # folded weight (resident)
                pl.BlockSpec((1, C), lambda i: (0, 0)),          # folded bias
            ],
            # C=16 < 128 lanes -> masked stores; negligible at this size.
            out_specs=pl.BlockSpec((bb, C), lambda i: (i, 0)),
        ),
        compiler_params=pltpu.CompilerParams(
            dimension_semantics=("parallel",),   # batch tiles are independent
            vmem_limit_bytes=vmem_limit,
        ),
        cost_estimate=cost,
    )(x, w_eff, b_eff)


def _reference_forward(x, w1, b1, w2, b2):
    # Faithful f32 reference of the original op order.
    h = x @ w1 + b1
    pooled = jnp.mean(h, axis=1)
    return jax.nn.sigmoid(pooled @ w2 + b2)


if __name__ == "__main__":
    B, S, H, C = 2, 8, HIDDEN, 16  # n_classes = 16

    key = jax.random.PRNGKey(0)
    kx, kw1, kb1, kw2, kb2 = jax.random.split(key, 5)

    # "input_ids" as float embeddings (test-mode Linear expects last dim 768)
    x = jax.random.normal(kx, (B, S, H), dtype=jnp.float32)
    attention_mask = jnp.ones((B, S), dtype=jnp.int32)

    # Deterministic parameter init (PyTorch-Linear-like uniform +-1/sqrt(fan_in)).
    lim = 1.0 / jnp.sqrt(jnp.float32(H))
    w1 = jax.random.uniform(kw1, (H, H), jnp.float32, -lim, lim)   # (in, out)
    b1 = jax.random.uniform(kb1, (H,), jnp.float32, -lim, lim)
    w2 = jax.random.uniform(kw2, (H, C), jnp.float32, -lim, lim)   # (in, out)
    b2 = jax.random.uniform(kb2, (C,), jnp.float32, -lim, lim)

    # One-time weight fold (done at model-load time in a real deployment).
    w_eff, b_eff = jax.block_until_ready(fold_params(w1, b1, w2, b2, seq_len=S))

    probs = multi_label_classifier_forward(x, attention_mask, w_eff, b_eff)
    probs = jax.block_until_ready(probs)

    ref = _reference_forward(x, w1, b1, w2, b2)
    assert probs.shape == (B, C)
    # f32 activations, bf16 folded weight / MXU inputs, f32 accumulation:
    # agreement well within 2e-3 of the pure-f32 reference.
    assert jnp.allclose(probs, ref, atol=2e-3, rtol=0.0), float(
        jnp.max(jnp.abs(probs - ref)))

    print("KERNEL_OK")
</pallas_src>

<mosaic_0001>
module attributes {stable_mosaic.version = 11 : i64} {
  func.func @_mlc_kernel(%arg0: i32, %arg1: memref<2x8x768xf32, #tpu.memory_space<vmem>>, %arg2: memref<768x16xbf16, #tpu.memory_space<vmem>>, %arg3: memref<1x16xf32, #tpu.memory_space<vmem>>, %arg4: memref<2x16xf32, #tpu.memory_space<vmem>>) attributes {dimension_semantics = [#tpu.dimension_semantics<parallel>], iteration_bounds = array<i64: 1>, scalar_prefetch = 0 : i64, scratch_operands = 0 : i64, tpu.core_type = #tpu.core_type<tc>, window_params = [{transform_indices = @transform_0, window_bounds = array<i64: 2, 8, 768>}, {pipeline_mode = #tpu.pipeline_mode<synchronous>, transform_indices = @transform_1, window_bounds = array<i64: 768, 16>}, {pipeline_mode = #tpu.pipeline_mode<synchronous>, transform_indices = @transform_2, window_bounds = array<i64: 1, 16>}, {transform_indices = @transform_3, window_bounds = array<i64: 2, 16>}]} {
    %c0 = arith.constant 0 : index
    %c0_0 = arith.constant 0 : index
    %c0_1 = arith.constant 0 : index
    %0 = vector.load %arg1[%c0, %c0_0, %c0_1] : memref<2x8x768xf32, #tpu.memory_space<vmem>>, vector<2x8x768xf32>
    %cst = arith.constant dense<0.000000e+00> : vector<2x768xf32>
    %1 = vector.multi_reduction <add>, %0, %cst [1] : vector<2x8x768xf32> to vector<2x768xf32>
    %2 = arith.truncf %1 : vector<2x768xf32> to vector<2x768xbf16>
    %c0_2 = arith.constant 0 : index
    %c0_3 = arith.constant 0 : index
    %3 = vector.load %arg2[%c0_2, %c0_3] : memref<768x16xbf16, #tpu.memory_space<vmem>>, vector<768x16xbf16>
    %cst_4 = arith.constant dense<0.000000e+00> : vector<2x16xf32>
    %4 = tpu.matmul %2, %3, %cst_4 {dimension_numbers = #tpu.dot_dimension_numbers<[1], [0], [0], [1], [0, 0, 1, 1], [], []>} : vector<2x768xbf16>, vector<768x16xbf16>, vector<2x16xf32> -> vector<2x16xf32>
    %c0_5 = arith.constant 0 : index
    %c0_6 = arith.constant 0 : index
    %5 = vector.load %arg3[%c0_5, %c0_6] : memref<1x16xf32, #tpu.memory_space<vmem>>, vector<1x16xf32>
    %6 = vector.broadcast %5 : vector<1x16xf32> to vector<2x16xf32>
    %7 = arith.addf %4, %6 : vector<2x16xf32>
    %8 = arith.negf %7 : vector<2x16xf32>
    %9 = math.exp %8 : vector<2x16xf32>
    %cst_7 = arith.constant 1.000000e+00 : f32
    %10 = vector.broadcast %cst_7 : f32 to vector<2x16xf32>
    %11 = arith.addf %10, %9 : vector<2x16xf32>
    %12 = arith.divf %10, %11 : vector<2x16xf32>
    %c0_8 = arith.constant 0 : index
    %c0_9 = arith.constant 0 : index
    %13 = vector.load %arg4[%c0_8, %c0_9] : memref<2x16xf32, #tpu.memory_space<vmem>>, vector<2x16xf32>
    tpu.vector_store %arg4[%c0_8, %c0_9], %12 {strides = array<i32>} : memref<2x16xf32, #tpu.memory_space<vmem>>, vector<2x16xf32>,
    return
  }
  func.func @transform_0(%arg0: i32) -> (i32, i32, i32) {
    %c0_i32 = arith.constant 0 : i32
    %c0_i32_0 = arith.constant 0 : i32
    %c0_i32_1 = arith.constant 0 : i32
    return %arg0, %c0_i32, %c0_i32_0 : i32, i32, i32
  }
  func.func @transform_1(%arg0: i32) -> (i32, i32) {
    %c0_i32 = arith.constant 0 : i32
    %c0_i32_0 = arith.constant 0 : i32
    %c0_i32_1 = arith.constant 0 : i32
    return %c0_i32, %c0_i32_0 : i32, i32
  }
  func.func @transform_2(%arg0: i32) -> (i32, i32) {
    %c0_i32 = arith.constant 0 : i32
    %c0_i32_0 = arith.constant 0 : i32
    %c0_i32_1 = arith.constant 0 : i32
    return %c0_i32, %c0_i32_0 : i32, i32
  }
  func.func @transform_3(%arg0: i32) -> (i32, i32) {
    %c0_i32 = arith.constant 0 : i32
    %c0_i32_0 = arith.constant 0 : i32
    return %arg0, %c0_i32 : i32, i32
  }
}

</mosaic_0001>

<llo_original>
// kernel: tpu_custom_call.1
$region0: #{tpu_custom_call.1}
  #allocation0 [shape = 'u32[]', space=smem, size = 0x4, offset = 0x4, fixed_abs, tag = 'smem constant byte address 0x4 - core index']
  #allocation1 [shape = 'u32[72,128]{1,0:T(1,128)}', space=vmem, size = 0x9000, scoped, tag = 'internal scratch']
  %s0 = inlined_call_operand.vmem [shape: f32[2,8,768], index: 0, kind: input, shape index: {}]
  %s1 = inlined_call_operand.vmem [shape: bf16[768,16], index: 1, kind: input, shape index: {}]
  %s2 = inlined_call_operand.vmem [shape: f32[1,16], index: 2, kind: input, shape index: {}]
  %s3 = inlined_call_operand.hbm [shape: f32[2,16], index: 3, kind: output, shape index: {}]
  %s4 = sld [smem:[#allocation0]]
  $region22: #{tpu_custom_call.1} parent=0
    _
  %s6 = ssub.s32 1, %s4
  %s7 = scalar_select 0, %s6, %s4
  $region1: #{tpu_custom_call.1} parent=0
    #allocation2 [shape = 'u8[1024]{0}', space=vmem, size = 0x400, scoped, tag = 'output window, operand 0, single buffered']
    #allocation3 [shape = 's32[1]{0}', space=sflag, size = 0x4, scoped, tag = 'scoped memory for tpu_custom_call.1']
    %8 = vsyncpa [#allocation3], 0
    // Predicated region
    $region2: #{tpu_custom_call.1} parent=1 // pred_check
      _
    $region3: #{tpu_custom_call.1} parent=1 // pred_check_branch
      %10 = sbr.rel (0) target = $region5
    $region4: #{tpu_custom_call.1} parent=1 // pred_region
      _
    $region5: #{tpu_custom_call.1} parent=1 // pred_fallthru
      _
    // Predicated region
    $region6: #{tpu_custom_call.1} parent=1 // pred_check
      _
    $region7: #{tpu_custom_call.1} parent=1 // pred_check_branch
      %12 = sbr.rel (0) target = $region9
    $region8: #{tpu_custom_call.1} parent=1 // pred_region
      _
    $region9: #{tpu_custom_call.1} parent=1 // pred_fallthru
      _
    // Predicated region
    $region10: #{tpu_custom_call.1} parent=1 // pred_check
      _
    $region11: #{tpu_custom_call.1} parent=1 // pred_check_branch
      %14 = sbr.rel (0) target = $region13
    $region12: #{tpu_custom_call.1} parent=1 // pred_region
      _
    $region13: #{tpu_custom_call.1} parent=1 // pred_fallthru
      _
    %v15 = vld [vmem:[%s0] sm:$0xff]
    %v16 = vld [vmem:[%s0 + $0x8] sm:$0xff]
    %v17 = vld [vmem:[%s0 + $0x10] sm:$0xff]
    %v18 = vld [vmem:[%s0 + $0x18] sm:$0xff]
    %v19 = vld [vmem:[%s0 + $0x20] sm:$0xff]
    %v20 = vld [vmem:[%s0 + $0x28] sm:$0xff]
    %v21 = vld [vmem:[%s0 + $0x30] sm:$0xff]
    %v22 = vld [vmem:[%s0 + $0x38] sm:$0xff]
    %v23 = vld [vmem:[%s0 + $0x40] sm:$0xff]
    %v24 = vld [vmem:[%s0 + $0x48] sm:$0xff]
    %v25 = vld [vmem:[%s0 + $0x50] sm:$0xff]
    %v26 = vld [vmem:[%s0 + $0x58] sm:$0xff]
    %v27 = vrot.slane %v15, 4
    %v28 = vadd.f32 %v15, %v27
    %v29 = vrot.slane %v28, 2
    %v30 = vadd.f32 %v28, %v29
    %v31 = vrot.slane %v30, 1
    %v32 = vadd.f32 %v30, %v31
    %v33 = vrot.slane %v16, 4
    %v34 = vadd.f32 %v16, %v33
    %v35 = vrot.slane %v34, 2
    %v36 = vadd.f32 %v34, %v35
    %v37 = vrot.slane %v36, 1
    %v38 = vadd.f32 %v36, %v37
    %v39 = vrot.slane %v17, 4
    %v40 = vadd.f32 %v17, %v39
    %v41 = vrot.slane %v40, 2
    %v42 = vadd.f32 %v40, %v41
    %v43 = vrot.slane %v42, 1
    %v44 = vadd.f32 %v42, %v43
    %v45 = vrot.slane %v18, 4
    %v46 = vadd.f32 %v18, %v45
    %v47 = vrot.slane %v46, 2
    %v48 = vadd.f32 %v46, %v47
    %v49 = vrot.slane %v48, 1
    %v50 = vadd.f32 %v48, %v49
    %v51 = vrot.slane %v19, 4
    %v52 = vadd.f32 %v19, %v51
    %v53 = vrot.slane %v52, 2
    %v54 = vadd.f32 %v52, %v53
    %v55 = vrot.slane %v54, 1
    %v56 = vadd.f32 %v54, %v55
    %v57 = vrot.slane %v20, 4
    %v58 = vadd.f32 %v20, %v57
    %v59 = vrot.slane %v58, 2
    %v60 = vadd.f32 %v58, %v59
    %v61 = vrot.slane %v60, 1
    %v62 = vadd.f32 %v60, %v61
    %v63 = vrot.slane %v21, 4
    %v64 = vadd.f32 %v21, %v63
    %v65 = vrot.slane %v64, 2
    %v66 = vadd.f32 %v64, %v65
    %v67 = vrot.slane %v66, 1
    %v68 = vadd.f32 %v66, %v67
    %v69 = vrot.slane %v22, 4
    %v70 = vadd.f32 %v22, %v69
    %v71 = vrot.slane %v70, 2
    %v72 = vadd.f32 %v70, %v71
    %v73 = vrot.slane %v72, 1
    %v74 = vadd.f32 %v72, %v73
    %v75 = vrot.slane %v23, 4
    %v76 = vadd.f32 %v23, %v75
    %v77 = vrot.slane %v76, 2
    %v78 = vadd.f32 %v76, %v77
    %v79 = vrot.slane %v78, 1
    %v80 = vadd.f32 %v78, %v79
    %v81 = vrot.slane %v24, 4
    %v82 = vadd.f32 %v24, %v81
    %v83 = vrot.slane %v82, 2
    %v84 = vadd.f32 %v82, %v83
    %v85 = vrot.slane %v84, 1
    %v86 = vadd.f32 %v84, %v85
    %v87 = vrot.slane %v25, 4
    %v88 = vadd.f32 %v25, %v87
    %v89 = vrot.slane %v88, 2
    %v90 = vadd.f32 %v88, %v89
    %v91 = vrot.slane %v90, 1
    %v92 = vadd.f32 %v90, %v91
    %v93 = vrot.slane %v26, 4
    %v94 = vadd.f32 %v26, %v93
    %v95 = vrot.slane %v94, 2
    %v96 = vadd.f32 %v94, %v95
    %v97 = vrot.slane %v96, 1
    %v98 = vadd.f32 %v96, %v97
    %v99 = vpack.c.bf16 %v32, %v32
    %v100 = vpack.c.bf16 %v38, %v38
    %v101 = vpack.c.bf16 %v44, %v44
    %v102 = vpack.c.bf16 %v50, %v50
    %v103 = vpack.c.bf16 %v56, %v56
    %v104 = vpack.c.bf16 %v62, %v62
    %v105 = vpack.c.bf16 %v68, %v68
    %v106 = vpack.c.bf16 %v74, %v74
    %v107 = vpack.c.bf16 %v80, %v80
    %v108 = vpack.c.bf16 %v86, %v86
    %v109 = vpack.c.bf16 %v92, %v92
    %v110 = vpack.c.bf16 %v98, %v98
    %v111 = vld [vmem:[%s1] sm:$0xf]
    %v112 = vld [vmem:[%s1 + $0x4] sm:$0xf]
    %v113 = vld [vmem:[%s1 + $0x8] sm:$0xf]
    %v114 = vld [vmem:[%s1 + $0xc] sm:$0xf]
    %v115 = vld [vmem:[%s1 + $0x10] sm:$0xf]
    %v116 = vld [vmem:[%s1 + $0x14] sm:$0xf]
    %v117 = vld [vmem:[%s1 + $0x18] sm:$0xf]
    %v118 = vld [vmem:[%s1 + $0x1c] sm:$0xf]
    %v119 = vld [vmem:[%s1 + $0x20] sm:$0xf]
    %v120 = vld [vmem:[%s1 + $0x24] sm:$0xf]
    %v121 = vld [vmem:[%s1 + $0x28] sm:$0xf]
    %v122 = vld [vmem:[%s1 + $0x2c] sm:$0xf]
    %v123 = vld [vmem:[%s1 + $0x30] sm:$0xf]
    %v124 = vld [vmem:[%s1 + $0x34] sm:$0xf]
    %v125 = vld [vmem:[%s1 + $0x38] sm:$0xf]
    %v126 = vld [vmem:[%s1 + $0x3c] sm:$0xf]
    %v127 = vld [vmem:[%s1 + $0x40] sm:$0xf]
    %v128 = vld [vmem:[%s1 + $0x44] sm:$0xf]
    %v129 = vld [vmem:[%s1 + $0x48] sm:$0xf]
    %v130 = vld [vmem:[%s1 + $0x4c] sm:$0xf]
    %v131 = vld [vmem:[%s1 + $0x50] sm:$0xf]
    %v132 = vld [vmem:[%s1 + $0x54] sm:$0xf]
    %v133 = vld [vmem:[%s1 + $0x58] sm:$0xf]
    %v134 = vld [vmem:[%s1 + $0x5c] sm:$0xf]
    %v135 = vld [vmem:[%s1 + $0x60] sm:$0xf]
    %v136 = vld [vmem:[%s1 + $0x64] sm:$0xf]
    %v137 = vld [vmem:[%s1 + $0x68] sm:$0xf]
    %v138 = vld [vmem:[%s1 + $0x6c] sm:$0xf]
    %v139 = vld [vmem:[%s1 + $0x70] sm:$0xf]
    %v140 = vld [vmem:[%s1 + $0x74] sm:$0xf]
    %v141 = vld [vmem:[%s1 + $0x78] sm:$0xf]
    %v142 = vld [vmem:[%s1 + $0x7c] sm:$0xf]
    %v143 = vld [vmem:[%s1 + $0x80] sm:$0xf]
    %v144 = vld [vmem:[%s1 + $0x84] sm:$0xf]
    %v145 = vld [vmem:[%s1 + $0x88] sm:$0xf]
    %v146 = vld [vmem:[%s1 + $0x8c] sm:$0xf]
    %v147 = vld [vmem:[%s1 + $0x90] sm:$0xf]
    %v148 = vld [vmem:[%s1 + $0x94] sm:$0xf]
    %v149 = vld [vmem:[%s1 + $0x98] sm:$0xf]
    %v150 = vld [vmem:[%s1 + $0x9c] sm:$0xf]
    %v151 = vld [vmem:[%s1 + $0xa0] sm:$0xf]
    %v152 = vld [vmem:[%s1 + $0xa4] sm:$0xf]
    %v153 = vld [vmem:[%s1 + $0xa8] sm:$0xf]
    %v154 = vld [vmem:[%s1 + $0xac] sm:$0xf]
    %v155 = vld [vmem:[%s1 + $0xb0] sm:$0xf]
    %v156 = vld [vmem:[%s1 + $0xb4] sm:$0xf]
    %v157 = vld [vmem:[%s1 + $0xb8] sm:$0xf]
    %v158 = vld [vmem:[%s1 + $0xbc] sm:$0xf]
    %v159 = vld [vmem:[%s1 + $0xc0] sm:$0xf]
    %v160 = vld [vmem:[%s1 + $0xc4] sm:$0xf]
    %v161 = vld [vmem:[%s1 + $0xc8] sm:$0xf]
    %v162 = vld [vmem:[%s1 + $0xcc] sm:$0xf]
    %v163 = vld [vmem:[%s1 + $0xd0] sm:$0xf]
    %v164 = vld [vmem:[%s1 + $0xd4] sm:$0xf]
    %v165 = vld [vmem:[%s1 + $0xd8] sm:$0xf]
    %v166 = vld [vmem:[%s1 + $0xdc] sm:$0xf]
    %v167 = vld [vmem:[%s1 + $0xe0] sm:$0xf]
    %v168 = vld [vmem:[%s1 + $0xe4] sm:$0xf]
    %v169 = vld [vmem:[%s1 + $0xe8] sm:$0xf]
    %v170 = vld [vmem:[%s1 + $0xec] sm:$0xf]
    %v171 = vld [vmem:[%s1 + $0xf0] sm:$0xf]
    %v172 = vld [vmem:[%s1 + $0xf4] sm:$0xf]
    %v173 = vld [vmem:[%s1 + $0xf8] sm:$0xf]
    %v174 = vld [vmem:[%s1 + $0xfc] sm:$0xf]
    %v175 = vld [vmem:[%s1 + $0x100] sm:$0xf]
    %v176 = vld [vmem:[%s1 + $0x104] sm:$0xf]
    %v177 = vld [vmem:[%s1 + $0x108] sm:$0xf]
    %v178 = vld [vmem:[%s1 + $0x10c] sm:$0xf]
    %v179 = vld [vmem:[%s1 + $0x110] sm:$0xf]
    %v180 = vld [vmem:[%s1 + $0x114] sm:$0xf]
    %v181 = vld [vmem:[%s1 + $0x118] sm:$0xf]
    %v182 = vld [vmem:[%s1 + $0x11c] sm:$0xf]
    %v183 = vld [vmem:[%s1 + $0x120] sm:$0xf]
    %v184 = vld [vmem:[%s1 + $0x124] sm:$0xf]
    %v185 = vld [vmem:[%s1 + $0x128] sm:$0xf]
    %v186 = vld [vmem:[%s1 + $0x12c] sm:$0xf]
    %v187 = vld [vmem:[%s1 + $0x130] sm:$0xf]
    %v188 = vld [vmem:[%s1 + $0x134] sm:$0xf]
    %v189 = vld [vmem:[%s1 + $0x138] sm:$0xf]
    %v190 = vld [vmem:[%s1 + $0x13c] sm:$0xf]
    %v191 = vld [vmem:[%s1 + $0x140] sm:$0xf]
    %v192 = vld [vmem:[%s1 + $0x144] sm:$0xf]
    %v193 = vld [vmem:[%s1 + $0x148] sm:$0xf]
    %v194 = vld [vmem:[%s1 + $0x14c] sm:$0xf]
    %v195 = vld [vmem:[%s1 + $0x150] sm:$0xf]
    %v196 = vld [vmem:[%s1 + $0x154] sm:$0xf]
    %v197 = vld [vmem:[%s1 + $0x158] sm:$0xf]
    %v198 = vld [vmem:[%s1 + $0x15c] sm:$0xf]
    %v199 = vld [vmem:[%s1 + $0x160] sm:$0xf]
    %v200 = vld [vmem:[%s1 + $0x164] sm:$0xf]
    %v201 = vld [vmem:[%s1 + $0x168] sm:$0xf]
    %v202 = vld [vmem:[%s1 + $0x16c] sm:$0xf]
    %v203 = vld [vmem:[%s1 + $0x170] sm:$0xf]
    %v204 = vld [vmem:[%s1 + $0x174] sm:$0xf]
    %v205 = vld [vmem:[%s1 + $0x178] sm:$0xf]
    %v206 = vld [vmem:[%s1 + $0x17c] sm:$0xf]
    %v207 = vld [vmem:[%s2] sm:$0x1]
    %v209 = vperm.slane %v207, 0
    %v223 = vunpack.c.l.b16 %v99
    %v224 = vunpack.c.l.b16 %v100
    %v225 = vunpack.c.l.b16 %v101
    %v226 = vunpack.c.l.b16 %v102
    %v227 = vunpack.c.l.b16 %v103
    %v228 = vunpack.c.l.b16 %v104
    %v229 = vunpack.c.l.b16 %v105
    %v230 = vunpack.c.l.b16 %v106
    %v231 = vunpack.c.l.b16 %v107
    %v232 = vunpack.c.l.b16 %v108
    %v233 = vunpack.c.l.b16 %v109
    %v234 = vunpack.c.l.b16 %v110
    %vm235 = vcmask 1041409
    %v236 = vsel %vm235, %v229, %v223
    %v237 = vsel %vm235, %v230, %v224
    %v238 = vsel %vm235, %v231, %v225
    %v239 = vsel %vm235, %v232, %v226
    %v240 = vsel %vm235, %v233, %v227
    %v241 = vsel %vm235, %v234, %v228
    %v242 = vpack.c.b16 %v236, %v236
    %v243 = vpack.c.b16 %v237, %v237
    %v244 = vpack.c.b16 %v238, %v238
    %v245 = vpack.c.b16 %v239, %v239
    %v246 = vpack.c.b16 %v240, %v240
    %v247 = vpack.c.b16 %v241, %v241
    %v350 = vunpack.c.l.b16 %v111
    %v351 = vunpack.c.l.b16 %v112
    %v352 = vunpack.c.l.b16 %v113
    %v353 = vunpack.c.l.b16 %v114
    %v354 = vunpack.c.l.b16 %v115
    %v355 = vunpack.c.l.b16 %v116
    %v356 = vunpack.c.l.b16 %v117
    %v357 = vunpack.c.l.b16 %v118
    %v358 = vunpack.c.l.b16 %v119
    %v359 = vunpack.c.l.b16 %v120
    %v360 = vunpack.c.l.b16 %v121
    %v361 = vunpack.c.l.b16 %v122
    %v362 = vunpack.c.l.b16 %v123
    %v363 = vunpack.c.l.b16 %v124
    %v364 = vunpack.c.l.b16 %v125
    %v365 = vunpack.c.l.b16 %v126
    %v366 = vunpack.c.l.b16 %v127
    %v367 = vunpack.c.l.b16 %v128
    %v368 = vunpack.c.l.b16 %v129
    %v369 = vunpack.c.l.b16 %v130
    %v370 = vunpack.c.l.b16 %v131
    %v371 = vunpack.c.l.b16 %v132
    %v372 = vunpack.c.l.b16 %v133
    %v373 = vunpack.c.l.b16 %v134
    %v374 = vunpack.c.l.b16 %v135
    %v375 = vunpack.c.l.b16 %v136
    %v376 = vunpack.c.l.b16 %v137
    %v377 = vunpack.c.l.b16 %v138
    %v378 = vunpack.c.l.b16 %v139
    %v379 = vunpack.c.l.b16 %v140
    %v380 = vunpack.c.l.b16 %v141
    %v381 = vunpack.c.l.b16 %v142
    %v382 = vunpack.c.l.b16 %v143
    %v383 = vunpack.c.l.b16 %v144
    %v384 = vunpack.c.l.b16 %v145
    %v385 = vunpack.c.l.b16 %v146
    %v386 = vunpack.c.l.b16 %v147
    %v387 = vunpack.c.l.b16 %v148
    %v388 = vunpack.c.l.b16 %v149
    %v389 = vunpack.c.l.b16 %v150
    %v390 = vunpack.c.l.b16 %v151
    %v391 = vunpack.c.l.b16 %v152
    %v392 = vunpack.c.l.b16 %v153
    %v393 = vunpack.c.l.b16 %v154
    %v394 = vunpack.c.l.b16 %v155
    %v395 = vunpack.c.l.b16 %v156
    %v396 = vunpack.c.l.b16 %v157
    %v397 = vunpack.c.l.b16 %v158
    %v398 = vunpack.c.l.b16 %v159
    %v399 = vunpack.c.l.b16 %v160
    %v400 = vunpack.c.l.b16 %v161
    %v401 = vunpack.c.l.b16 %v162
    %v402 = vunpack.c.l.b16 %v163
    %v403 = vunpack.c.l.b16 %v164
    %v404 = vunpack.c.l.b16 %v165
    %v405 = vunpack.c.l.b16 %v166
    %v406 = vunpack.c.l.b16 %v167
    %v407 = vunpack.c.l.b16 %v168
    %v408 = vunpack.c.l.b16 %v169
    %v409 = vunpack.c.l.b16 %v170
    %v410 = vunpack.c.l.b16 %v171
    %v411 = vunpack.c.l.b16 %v172
    %v412 = vunpack.c.l.b16 %v173
    %v413 = vunpack.c.l.b16 %v174
    %v414 = vunpack.c.l.b16 %v175
    %v415 = vunpack.c.l.b16 %v176
    %v416 = vunpack.c.l.b16 %v177
    %v417 = vunpack.c.l.b16 %v178
    %v418 = vunpack.c.l.b16 %v179
    %v419 = vunpack.c.l.b16 %v180
    %v420 = vunpack.c.l.b16 %v181
    %v421 = vunpack.c.l.b16 %v182
    %v422 = vunpack.c.l.b16 %v183
    %v423 = vunpack.c.l.b16 %v184
    %v424 = vunpack.c.l.b16 %v185
    %v425 = vunpack.c.l.b16 %v186
    %v426 = vunpack.c.l.b16 %v187
    %v427 = vunpack.c.l.b16 %v188
    %v428 = vunpack.c.l.b16 %v189
    %v429 = vunpack.c.l.b16 %v190
    %v430 = vunpack.c.l.b16 %v191
    %v431 = vunpack.c.l.b16 %v192
    %v432 = vunpack.c.l.b16 %v193
    %v433 = vunpack.c.l.b16 %v194
    %v434 = vunpack.c.l.b16 %v195
    %v435 = vunpack.c.l.b16 %v196
    %v436 = vunpack.c.l.b16 %v197
    %v437 = vunpack.c.l.b16 %v198
    %v438 = vunpack.c.l.b16 %v199
    %v439 = vunpack.c.l.b16 %v200
    %v440 = vunpack.c.l.b16 %v201
    %v441 = vunpack.c.l.b16 %v202
    %v442 = vunpack.c.l.b16 %v203
    %v443 = vunpack.c.l.b16 %v204
    %v444 = vunpack.c.l.b16 %v205
    %v445 = vunpack.c.l.b16 %v206
    %v446 = vpack.c.b16 %v351, %v350
    %v447 = vpack.c.b16 %v353, %v352
    %v448 = vpack.c.b16 %v355, %v354
    %v449 = vpack.c.b16 %v357, %v356
    %v450 = vpack.c.b16 %v359, %v358
    %v451 = vpack.c.b16 %v361, %v360
    %v452 = vpack.c.b16 %v363, %v362
    %v453 = vpack.c.b16 %v365, %v364
    %v454 = vpack.c.b16 %v367, %v366
    %v455 = vpack.c.b16 %v369, %v368
    %v456 = vpack.c.b16 %v371, %v370
    %v457 = vpack.c.b16 %v373, %v372
    %v458 = vpack.c.b16 %v375, %v374
    %v459 = vpack.c.b16 %v377, %v376
    %v460 = vpack.c.b16 %v379, %v378
    %v461 = vpack.c.b16 %v381, %v380
    %v462 = vpack.c.b16 %v383, %v382
    %v463 = vpack.c.b16 %v385, %v384
    %v464 = vpack.c.b16 %v387, %v386
    %v465 = vpack.c.b16 %v389, %v388
    %v466 = vpack.c.b16 %v391, %v390
    %v467 = vpack.c.b16 %v393, %v392
    %v468 = vpack.c.b16 %v395, %v394
    %v469 = vpack.c.b16 %v397, %v396
    %v470 = vpack.c.b16 %v399, %v398
    %v471 = vpack.c.b16 %v401, %v400
    %v472 = vpack.c.b16 %v403, %v402
    %v473 = vpack.c.b16 %v405, %v404
    %v474 = vpack.c.b16 %v407, %v406
    %v475 = vpack.c.b16 %v409, %v408
    %v476 = vpack.c.b16 %v411, %v410
    %v477 = vpack.c.b16 %v413, %v412
    %v478 = vpack.c.b16 %v415, %v414
    %v479 = vpack.c.b16 %v417, %v416
    %v480 = vpack.c.b16 %v419, %v418
    %v481 = vpack.c.b16 %v421, %v420
    %v482 = vpack.c.b16 %v423, %v422
    %v483 = vpack.c.b16 %v425, %v424
    %v484 = vpack.c.b16 %v427, %v426
    %v485 = vpack.c.b16 %v429, %v428
    %v486 = vpack.c.b16 %v431, %v430
    %v487 = vpack.c.b16 %v433, %v432
    %v488 = vpack.c.b16 %v435, %v434
    %v489 = vpack.c.b16 %v437, %v436
    %v490 = vpack.c.b16 %v439, %v438
    %v491 = vpack.c.b16 %v441, %v440
    %v492 = vpack.c.b16 %v443, %v442
    %v493 = vpack.c.b16 %v445, %v444
    %542 = vmatpush.bf16.msra.mxu0 %v453
    %543 = vmatpush.bf16.msra.mxu0 %v452
    %544 = vmatpush.bf16.msra.mxu0 %v451
    %545 = vmatpush.bf16.msra.mxu0 %v450
    %546 = vmatpush.bf16.msra.mxu0 %v449
    %547 = vmatpush.bf16.msra.mxu0 %v448
    %548 = vmatpush.bf16.msra.mxu0 %v447
    %549 = vmatpush.bf16.msra.mxu0 %v446
    %550 = vmatmul.bf16.gmra.mxu0 %v242
    %v551 = vpop.f32.mrf.mxu0
    %v552 = vadd.f32 %v209, %v551
    %v553 = vpop.f32.mrf.mxu0
    %554 = vdwg.mxu0
    %555 = vmatpush.bf16.msra.mxu0 %v461
    %556 = vmatpush.bf16.msra.mxu0 %v460
    %557 = vmatpush.bf16.msra.mxu0 %v459
    %558 = vmatpush.bf16.msra.mxu0 %v458
    %559 = vmatpush.bf16.msra.mxu0 %v457
    %560 = vmatpush.bf16.msra.mxu0 %v456
    %561 = vmatpush.bf16.msra.mxu0 %v455
    %562 = vmatpush.bf16.msra.mxu0 %v454
    %563 = vmatmul.bf16.gmra.mxu0 %v243
    %v564 = vpop.f32.mrf.mxu0
    %v565 = vadd.f32 %v552, %v564
    %v566 = vpop.f32.mrf.mxu0
    %567 = vdwg.mxu0
    %568 = vmatpush.bf16.msra.mxu0 %v469
    %569 = vmatpush.bf16.msra.mxu0 %v468
    %570 = vmatpush.bf16.msra.mxu0 %v467
    %571 = vmatpush.bf16.msra.mxu0 %v466
    %572 = vmatpush.bf16.msra.mxu0 %v465
    %573 = vmatpush.bf16.msra.mxu0 %v464
    %574 = vmatpush.bf16.msra.mxu0 %v463
    %575 = vmatpush.bf16.msra.mxu0 %v462
    %576 = vmatmul.bf16.gmra.mxu0 %v244
    %v577 = vpop.f32.mrf.mxu0
    %v578 = vadd.f32 %v565, %v577
    %v579 = vpop.f32.mrf.mxu0
    %580 = vdwg.mxu0
    %581 = vmatpush.bf16.msra.mxu0 %v477
    %582 = vmatpush.bf16.msra.mxu0 %v476
    %583 = vmatpush.bf16.msra.mxu0 %v475
    %584 = vmatpush.bf16.msra.mxu0 %v474
    %585 = vmatpush.bf16.msra.mxu0 %v473
    %586 = vmatpush.bf16.msra.mxu0 %v472
    %587 = vmatpush.bf16.msra.mxu0 %v471
    %588 = vmatpush.bf16.msra.mxu0 %v470
    %589 = vmatmul.bf16.gmra.mxu0 %v245
    %v590 = vpop.f32.mrf.mxu0
    %v591 = vadd.f32 %v578, %v590
    %v592 = vpop.f32.mrf.mxu0
    %593 = vdwg.mxu0
    %594 = vmatpush.bf16.msra.mxu0 %v485
    %595 = vmatpush.bf16.msra.mxu0 %v484
    %596 = vmatpush.bf16.msra.mxu0 %v483
    %597 = vmatpush.bf16.msra.mxu0 %v482
    %598 = vmatpush.bf16.msra.mxu0 %v481
    %599 = vmatpush.bf16.msra.mxu0 %v480
    %600 = vmatpush.bf16.msra.mxu0 %v479
    %601 = vmatpush.bf16.msra.mxu0 %v478
    %602 = vmatmul.bf16.gmra.mxu0 %v246
    %v603 = vpop.f32.mrf.mxu0
    %v604 = vadd.f32 %v591, %v603
    %v605 = vpop.f32.mrf.mxu0
    %606 = vdwg.mxu0
    %607 = vmatpush.bf16.msra.mxu0 %v493
    %608 = vmatpush.bf16.msra.mxu0 %v492
    %609 = vmatpush.bf16.msra.mxu0 %v491
    %610 = vmatpush.bf16.msra.mxu0 %v490
    %611 = vmatpush.bf16.msra.mxu0 %v489
    %612 = vmatpush.bf16.msra.mxu0 %v488
    %613 = vmatpush.bf16.msra.mxu0 %v487
    %614 = vmatpush.bf16.msra.mxu0 %v486
    %615 = vmatmul.bf16.gmra.mxu0 %v247
    %v616 = vpop.f32.mrf.mxu0
    %v617 = vadd.f32 %v604, %v616
    %v618 = vpop.f32.mrf.mxu0
    %619 = vdwg.mxu0
    %v620 = vxor.u32 %v617, 2147483648
    %v621 = vmul.f32 %v620, 1.442695
    %v622 = vpow.pop %v621
    %v623 = vadd.f32 %v622, 1.0
    %v624 = vrcp.pop %v623
    %v625 = vmul.f32 %v623, %v624
    %v626 = vsub.f32 1.0, %v625
    %v627 = vmul.f32 %v624, %v626
    %v628 = vadd.f32 %v624, %v627
    %vm629 = vweird.f32 %v623
    %vm630 = vweird.f32 %v624
    %vm631 = vmor %vm629, %vm630
    %v632 = vsel %vm631, %v624, %v628
    %v633 = vand.u32 2147483647, %v623
    %vm634 = vcmp.eq.f32.partialorder %v633, 8.507059e+37
    %v635 = vand.u32 %v623, 2147483648
    %v636 = vor.u32 1.1754944e-38, %v635
    %v637 = vsel %vm634, %v636, %v632
    %v638 = vmul.f32 1.0, %v637
    %vm639 = vcmask 123904
    %640 = vst.msk [vmem:[#allocation2] sm:$0x3] %vm639, %v638
    // Predicated region
    $region14: #{tpu_custom_call.1} parent=1 // pred_check
      _
    $region15: #{tpu_custom_call.1} parent=1 // pred_check_branch
      %642 = sbr.rel (0) target = $region17
    $region16: #{tpu_custom_call.1} parent=1 // pred_region
      %644 = vsyncadd [#allocation3], 0
      %s646 = sshll.u32 [#allocation2], 4
      %s647 = int_to_ptr.vmem [resolvable:$true] %s646
      %s648 = sshll.u32 %s3, 4
      %s649 = int_to_ptr.hbm [resolvable:$true] %s648
      %651 = dma.vmem_to_hbm [thread:$0]  %s647, 32, %s649, [#allocation3]
    $region17: #{tpu_custom_call.1} parent=1 // pred_fallthru
      _
    // Predicated region
    $region18: #{tpu_custom_call.1} parent=1 // pred_check
      _
    $region19: #{tpu_custom_call.1} parent=1 // pred_check_branch
      %653 = sbr.rel (0) target = $region21
    $region20: #{tpu_custom_call.1} parent=1 // pred_region
      %655 = dma.done [#allocation3], 32
    $region21: #{tpu_custom_call.1} parent=1 // pred_fallthru
      _
    %656 = vsyncpa [#allocation3], 1

</llo_original>
